<compile_context>
chip_gen: v7x
topology: tpu7x:2x2x1
jax: 0.10.0
libtpu: 0.0.40
codegen_flags: <defaults>
</compile_context>

<pallas_src>
import functools
import math

import jax
import jax.numpy as jnp
from jax.experimental import pallas as pl
from jax.experimental.pallas import tpu as pltpu


_TARGET_BLOCK_BYTES = 2 * 1024 * 1024    # ~1-4 MiB tiles saturate the HBM roofline
_MAX_BLOCK_BYTES = 4 * 1024 * 1024       # above this, also tile the lane dimension
_MIN_GRID_STEPS = 8                      # keep the DMA pipeline / v7x dual TCs busy


def _round_up(a, m):
    return ((a + m - 1) // m) * m


def _round_down(a, m):
    return (a // m) * m


def _vmem_budget_bytes():
    """Generation-aware scoped-VMEM budget (used for vmem_limit_bytes)."""
    default = 32 * 1024 * 1024
    try:
        cap = int(pltpu.get_tpu_info().vmem_capacity_bytes)
    except Exception:
        return default
    # v5e/v6e (128 MiB physical) -> 64 MiB; v7x (64 MiB physical) -> 32 MiB.
    return max(default, min(cap // 2, 64 * 1024 * 1024))


def _choose_tx(x_len, row_bytes, sublane_mult, target_bytes):
    """Rows per block for full-width blocks.

    Preferences, in order: block <= ~target_bytes, >= _MIN_GRID_STEPS grid steps
    (software pipelining), an even step count (v7x dual-TC balance), a tx that
    divides x_len (no masked tail store on v5e), then the largest block.
    """
    if x_len <= sublane_mult:
        return x_len                                    # full-dim block (always legal)
    tx_max = max(sublane_mult, _round_down(target_bytes // row_bytes, sublane_mult))
    tx_max = min(tx_max, max(sublane_mult, _round_down(x_len, sublane_mult)))
    best, best_key = sublane_mult, None
    for tx in range(sublane_mult, tx_max + 1, sublane_mult):
        steps = -(-x_len // tx)
        penalty = 0
        if steps < _MIN_GRID_STEPS:
            penalty += 10 * (_MIN_GRID_STEPS - steps)   # lost DMA/compute overlap
        if steps % 2:
            penalty += 2                                # v7x dual-TC imbalance
        if x_len % tx:
            penalty += 1                                # masked vst tail (v5e)
        key = (penalty, -tx)                            # then prefer bigger blocks
        if best_key is None or key < best_key:
            best, best_key = tx, key
    return best


# ---------------------------------------------------------------------------
# Kernels
# ---------------------------------------------------------------------------

def _flat_kernel(x_ref, ab_ref, patches_ref, out_ref, *, content_scale):
    """Lane-dense (rows, lanes) blocks; lanes run over the (Y, B, C) flatten.

    x_ref:       (TX, 1)   linspace(-1, 1, X) rows of this block
    ab_ref:      (2, TL)   fused [A; B] phase constants (resident / per lane-chunk)
    patches_ref: (TX, TL)
    """
    ab = ab_ref[...]
    pos = jnp.cos(x_ref[...] * ab[0:1] + ab[1:2])                        # (TX, TL) f32
    out = patches_ref[...].astype(jnp.float32) * content_scale + pos
    out_ref[...] = out.astype(out_ref.dtype)


def _dedup_kernel(x_ref, ab_ref, patches_ref, out_ref, *, content_scale):
    """Dense 4-D (TX, Y, B, C) blocks; cos computed once per (x, y, c), broadcast over B.

    Cuts the transcendental count by B (the single EUP can bind on v7x with bf16 I/O).
    """
    ab = ab_ref[...]                                                     # (2, Y, 1, C)
    pos = jnp.cos(x_ref[...] * ab[0:1] + ab[1:2])                        # (TX, Y, 1, C)
    out = patches_ref[...].astype(jnp.float32) * content_scale + pos     # bcast over B
    out_ref[...] = out.astype(out_ref.dtype)


# ---------------------------------------------------------------------------
# Wrapper
# ---------------------------------------------------------------------------

def cape2d_forward(patches, w_x, w_y, content_scale,
                   target_block_bytes=_TARGET_BLOCK_BYTES,
                   max_block_bytes=_MAX_BLOCK_BYTES):
    """CAPE2d eval-mode forward.  patches: (X, Y, B, C) (batch_first=False layout)."""
    X, Y, B, C = patches.shape
    assert C % 2 == 0, "d_model (channels) must be even"
    half = C // 2
    ybc = Y * B * C
    f32 = jnp.float32
    itemsize = patches.dtype.itemsize
    sublane_mult = 8 * max(1, 4 // itemsize)        # 8 for f32, 16 for bf16, 32 for int8
    row_bytes = ybc * itemsize
    content_scale = float(content_scale)
    vmem_budget = _vmem_budget_bytes()

    # Phase constants folded over (y, c):  pos(x, y, c) = cos(x * A[c] + B[y, c]).
    w_x = w_x.reshape(half).astype(f32)
    w_y = w_y.reshape(half).astype(f32)
    w_cat_x = jnp.concatenate([w_x, w_x])                                    # (C,)
    w_cat_y = jnp.concatenate([w_y, w_y])                                    # (C,)
    offs = jnp.concatenate([jnp.zeros((half,), f32),
                            jnp.full((half,), jnp.pi / 2, dtype=f32)])       # (C,)
    y_vals = jnp.linspace(-1.0, 1.0, Y).astype(f32)                          # (Y,)
    a_yc = jnp.broadcast_to((jnp.pi * w_cat_x)[None, :], (Y, C))             # (Y, C)
    b_yc = jnp.pi * w_cat_y[None, :] * y_vals[:, None] - offs[None, :]       # (Y, C)
    x_lin = jnp.linspace(-1.0, 1.0, X).astype(f32)                           # (X,)

    use_dedup = (C % 128 == 0 and B % sublane_mult == 0
                 and sublane_mult * row_bytes <= max_block_bytes)

    cost = pl.CostEstimate(
        flops=4 * X * ybc,
        transcendentals=(X * Y * C) if use_dedup else (X * ybc),
        bytes_accessed=2 * X * row_bytes + 2 * Y * C * 4 + X * 4,
    )

    def cparams(sem):
        return pltpu.CompilerParams(dimension_semantics=sem,
                                    vmem_limit_bytes=int(vmem_budget))

    if use_dedup:
        # ---- EUP-dedup path: dense 4-D blocks, cos over (x, y, c) only ----
        tx = _choose_tx(X, row_bytes, sublane_mult, target_block_bytes)
        ab4 = jnp.stack([a_yc, b_yc])[:, :, None, :]                         # (2, Y, 1, C)
        x4 = x_lin.reshape(X, 1, 1, 1)
        kernel = functools.partial(_dedup_kernel, content_scale=content_scale)
        try:
            return pl.pallas_call(
                kernel,
                out_shape=jax.ShapeDtypeStruct((X, Y, B, C), patches.dtype),
                grid_spec=pltpu.PrefetchScalarGridSpec(
                    num_scalar_prefetch=0,
                    grid=(pl.cdiv(X, tx),),
                    in_specs=[
                        pl.BlockSpec((tx, 1, 1, 1), lambda i: (i, 0, 0, 0)),   # x rows
                        pl.BlockSpec((2, Y, 1, C), lambda i: (0, 0, 0, 0)),    # resident consts
                        pl.BlockSpec((tx, Y, B, C), lambda i: (i, 0, 0, 0)),   # patches
                    ],
                    out_specs=pl.BlockSpec((tx, Y, B, C), lambda i: (i, 0, 0, 0)),
                ),
                compiler_params=cparams(("parallel",)),
                cost_estimate=cost,
            )(x4, ab4, patches)
        except Exception:
            # Fall back to the flat lane-dense path (e.g. if this Mosaic build
            # rejects one of the 4-D broadcasts); correctness is unaffected.
            pass

    # ---- Flat lane-dense paths: patches viewed as (X, Y*B*C) (free reshape) ----
    patches2 = patches.reshape(X, ybc)
    ab = jnp.stack([
        jnp.broadcast_to(a_yc[:, None, :], (Y, B, C)).reshape(ybc),
        jnp.broadcast_to(b_yc[:, None, :], (Y, B, C)).reshape(ybc),
    ])                                                                       # (2, Y*B*C)
    x_col = x_lin.reshape(X, 1)
    kernel = functools.partial(_flat_kernel, content_scale=content_scale)

    lane_tiled = sublane_mult * row_bytes > max_block_bytes and ybc >= 128
    if not lane_tiled:
        tx = _choose_tx(X, row_bytes, sublane_mult, target_block_bytes)
        out2 = pl.pallas_call(
            kernel,
            out_shape=jax.ShapeDtypeStruct((X, ybc), patches.dtype),
            grid_spec=pltpu.PrefetchScalarGridSpec(
                num_scalar_prefetch=0,
                grid=(pl.cdiv(X, tx),),
                in_specs=[
                    pl.BlockSpec((tx, 1), lambda i: (i, 0)),      # x rows
                    pl.BlockSpec((2, ybc), lambda i: (0, 0)),     # fused consts (resident)
                    pl.BlockSpec((tx, ybc), lambda i: (i, 0)),    # patches row-block
                ],
                out_specs=pl.BlockSpec((tx, ybc), lambda i: (i, 0)),
            ),
            compiler_params=cparams(("parallel",)),
            cost_estimate=cost,
        )(x_col, ab, patches2)
        return out2.reshape(X, Y, B, C)

    # Wide rows: also tile the lane dim in 128-multiple chunks so in+out stay
    # double-buffered inside the scoped-VMEM budget (v7x: 32 MiB).
    tx = X if X <= sublane_mult else sublane_mult
    tl = max(128, _round_down(target_block_bytes // (tx * itemsize), 128))
    tl = min(tl, _round_up(ybc, 128))
    out2 = pl.pallas_call(
        kernel,
        out_shape=jax.ShapeDtypeStruct((X, ybc), patches.dtype),
        grid_spec=pltpu.PrefetchScalarGridSpec(
            num_scalar_prefetch=0,
            # Lane chunks on the OUTER axis -> the consts block index is unchanged
            # across the whole inner X sweep, so it is not re-fetched.
            grid=(pl.cdiv(ybc, tl), pl.cdiv(X, tx)),
            in_specs=[
                pl.BlockSpec((tx, 1), lambda j, i: (i, 0)),
                pl.BlockSpec((2, tl), lambda j, i: (0, j)),
                pl.BlockSpec((tx, tl), lambda j, i: (i, j)),
            ],
            out_specs=pl.BlockSpec((tx, tl), lambda j, i: (i, j)),
        ),
        compiler_params=cparams(("parallel", "parallel")),
        cost_estimate=cost,
    )(x_col, ab, patches2)
    return out2.reshape(X, Y, B, C)


def cape2d_reference(patches, w_x, w_y, content_scale):
    """Pure-JAX reference mirroring the PyTorch eval-mode forward."""
    X, Y, B, C = patches.shape
    half = C // 2
    w_x = w_x.reshape(half).astype(jnp.float32)
    w_y = w_y.reshape(half).astype(jnp.float32)
    x = jnp.linspace(-1.0, 1.0, X)
    y = jnp.linspace(-1.0, 1.0, Y)
    phase = jnp.pi * (w_x[None, None, :] * x[:, None, None]
                      + w_y[None, None, :] * y[None, :, None])               # (X, Y, half)
    pos_emb = jnp.concatenate([jnp.cos(phase), jnp.sin(phase)], axis=-1)     # (X, Y, C)
    return patches * content_scale + pos_emb[:, :, None, :]


if __name__ == "__main__":
    def _init_weights(d_model):
        half = d_model // 2
        rho = 10.0 ** jnp.linspace(0.0, 1.0, half)
        w_x = rho * jnp.cos(jnp.arange(half, dtype=jnp.float32))
        w_y = rho * jnp.sin(jnp.arange(half, dtype=jnp.float32))
        return w_x, w_y

    key = jax.random.PRNGKey(0)
    k1, k2, k3 = jax.random.split(key, 3)

    # 1) Primary small check (flat full-row path): (X, Y, B, C) = (8, 8, 2, 32).
    d_model = 32
    w_x, w_y = _init_weights(d_model)
    scale = math.sqrt(d_model)
    patches = jax.random.normal(k1, (8, 8, 2, d_model), dtype=jnp.float32)
    out = jax.block_until_ready(cape2d_forward(patches, w_x, w_y, scale))
    ref = cape2d_reference(patches, w_x, w_y, scale)
    assert out.shape == patches.shape
    assert jnp.allclose(out, ref, atol=1e-4, rtol=1e-5), "mismatch vs reference (flat)"

    # 2) EUP-dedup path (C % 128 == 0, B % 8 == 0): cos computed once per (x, y, c).
    d_model = 128
    w_x, w_y = _init_weights(d_model)
    scale = math.sqrt(d_model)
    patches = jax.random.normal(k2, (16, 4, 8, d_model), dtype=jnp.float32)
    out = jax.block_until_ready(cape2d_forward(patches, w_x, w_y, scale))
    ref = cape2d_reference(patches, w_x, w_y, scale)
    assert jnp.allclose(out, ref, atol=1e-4, rtol=1e-5), "mismatch vs reference (dedup)"

    # 3) Lane-tiled fallback path, forced with a tiny block budget on a small array.
    d_model = 64
    w_x, w_y = _init_weights(d_model)
    scale = math.sqrt(d_model)
    patches = jax.random.normal(k3, (32, 4, 2, d_model), dtype=jnp.float32)
    out = jax.block_until_ready(cape2d_forward(patches, w_x, w_y, scale,
                                               target_block_bytes=4096,
                                               max_block_bytes=4096))
    ref = cape2d_reference(patches, w_x, w_y, scale)
    assert jnp.allclose(out, ref, atol=1e-4, rtol=1e-5), "mismatch vs reference (lane-tiled)"

    print("KERNEL_OK")
</pallas_src>

<mosaic_0001>
module attributes {stable_mosaic.version = 11 : i64} {
  func.func @_flat_kernel(%arg0: i32, %arg1: memref<8x1xf32, #tpu.memory_space<vmem>>, %arg2: memref<2x512xf32, #tpu.memory_space<vmem>>, %arg3: memref<8x512xf32, #tpu.memory_space<vmem>>, %arg4: memref<8x512xf32, #tpu.memory_space<vmem>>) attributes {dimension_semantics = [#tpu.dimension_semantics<parallel>], iteration_bounds = array<i64: 1>, scalar_prefetch = 0 : i64, scratch_operands = 0 : i64, tpu.core_type = #tpu.core_type<tc>, window_params = [{transform_indices = @transform_0, window_bounds = array<i64: 8, 1>}, {pipeline_mode = #tpu.pipeline_mode<synchronous>, transform_indices = @transform_1, window_bounds = array<i64: 2, 512>}, {transform_indices = @transform_2, window_bounds = array<i64: 8, 512>}, {transform_indices = @transform_3, window_bounds = array<i64: 8, 512>}]} {
    %c0 = arith.constant 0 : index
    %c0_0 = arith.constant 0 : index
    %0 = vector.load %arg2[%c0, %c0_0] : memref<2x512xf32, #tpu.memory_space<vmem>>, vector<2x512xf32>
    %c0_1 = arith.constant 0 : index
    %c0_2 = arith.constant 0 : index
    %1 = vector.load %arg1[%c0_1, %c0_2] : memref<8x1xf32, #tpu.memory_space<vmem>>, vector<8x1xf32>
    %2 = vector.extract_strided_slice %0 {offsets = [0, 0], sizes = [1, 512], strides = [1, 1]} : vector<2x512xf32> to vector<1x512xf32>
    %3 = vector.broadcast %1 : vector<8x1xf32> to vector<8x512xf32>
    %4 = vector.broadcast %2 : vector<1x512xf32> to vector<8x512xf32>
    %5 = arith.mulf %3, %4 : vector<8x512xf32>
    %6 = vector.extract_strided_slice %0 {offsets = [1, 0], sizes = [1, 512], strides = [1, 1]} : vector<2x512xf32> to vector<1x512xf32>
    %7 = vector.broadcast %6 : vector<1x512xf32> to vector<8x512xf32>
    %8 = arith.addf %5, %7 : vector<8x512xf32>
    %9 = math.cos %8 : vector<8x512xf32>
    %c0_3 = arith.constant 0 : index
    %c0_4 = arith.constant 0 : index
    %10 = vector.load %arg3[%c0_3, %c0_4] : memref<8x512xf32, #tpu.memory_space<vmem>>, vector<8x512xf32>
    %cst = arith.constant 5.65685415 : f32
    %11 = vector.broadcast %cst : f32 to vector<8x512xf32>
    %12 = arith.mulf %10, %11 : vector<8x512xf32>
    %13 = arith.addf %12, %9 : vector<8x512xf32>
    %c0_5 = arith.constant 0 : index
    %c0_6 = arith.constant 0 : index
    %14 = vector.load %arg4[%c0_5, %c0_6] : memref<8x512xf32, #tpu.memory_space<vmem>>, vector<8x512xf32>
    tpu.vector_store %arg4[%c0_5, %c0_6], %13 {strides = array<i32>} : memref<8x512xf32, #tpu.memory_space<vmem>>, vector<8x512xf32>,
    return
  }
  func.func @transform_0(%arg0: i32) -> (i32, i32) {
    %c0_i32 = arith.constant 0 : i32
    %c0_i32_0 = arith.constant 0 : i32
    return %arg0, %c0_i32 : i32, i32
  }
  func.func @transform_1(%arg0: i32) -> (i32, i32) {
    %c0_i32 = arith.constant 0 : i32
    %c0_i32_0 = arith.constant 0 : i32
    %c0_i32_1 = arith.constant 0 : i32
    return %c0_i32, %c0_i32_0 : i32, i32
  }
  func.func @transform_2(%arg0: i32) -> (i32, i32) {
    %c0_i32 = arith.constant 0 : i32
    %c0_i32_0 = arith.constant 0 : i32
    return %arg0, %c0_i32 : i32, i32
  }
  func.func @transform_3(%arg0: i32) -> (i32, i32) {
    %c0_i32 = arith.constant 0 : i32
    %c0_i32_0 = arith.constant 0 : i32
    return %arg0, %c0_i32 : i32, i32
  }
}

</mosaic_0001>

<llo_original>
// kernel: tpu_custom_call.1
$region0: #{tpu_custom_call.1}
  #allocation0 [shape = 'u32[]', space=smem, size = 0x4, offset = 0x4, fixed_abs, tag = 'smem constant byte address 0x4 - core index']
  #allocation1 [shape = 'u32[144,128]{1,0:T(1,128)}', space=vmem, size = 0x12000, scoped, tag = 'internal scratch']
  %s0 = inlined_call_operand.vmem [shape: f32[8,1], index: 0, kind: input, shape index: {}]
  %s1 = inlined_call_operand.vmem [shape: f32[2,512], index: 1, kind: input, shape index: {}]
  %s2 = inlined_call_operand.hbm [shape: f32[8,512], index: 2, kind: input, shape index: {}]
  %s3 = inlined_call_operand.hbm [shape: f32[8,512], index: 3, kind: output, shape index: {}]
  %s4 = sld [smem:[#allocation0]]
  $region26: #{tpu_custom_call.1} parent=0
    _
  %s6 = ssub.s32 1, %s4
  %s7 = scalar_select 0, %s6, %s4
  $region1: #{tpu_custom_call.1} parent=0
    #allocation2 [shape = 'u8[16384]{0}', space=vmem, size = 0x4000, scoped, tag = 'input window, operand 2, single buffered']
    #allocation3 [shape = 's32[1]{0}', space=sflag, size = 0x4, scoped, tag = 'scoped memory for tpu_custom_call.1']
    #allocation4 [shape = 's32[1]{0}', space=sflag, size = 0x4, scoped, tag = 'scoped memory for tpu_custom_call.1']
    #allocation5 [shape = 'u8[16384]{0}', space=vmem, size = 0x4000, scoped, tag = 'output window, operand 0, single buffered']
    %8 = vsyncpa [#allocation3], 0
    %9 = vsyncpa [#allocation4], 0
    // Predicated region
    $region2: #{tpu_custom_call.1} parent=1 // pred_check
      _
    $region3: #{tpu_custom_call.1} parent=1 // pred_check_branch
      %11 = sbr.rel (0) target = $region5
    $region4: #{tpu_custom_call.1} parent=1 // pred_region
      _
    $region5: #{tpu_custom_call.1} parent=1 // pred_fallthru
      _
    // Predicated region
    $region6: #{tpu_custom_call.1} parent=1 // pred_check
      _
    $region7: #{tpu_custom_call.1} parent=1 // pred_check_branch
      %13 = sbr.rel (0) target = $region9
    $region8: #{tpu_custom_call.1} parent=1 // pred_region
      _
    $region9: #{tpu_custom_call.1} parent=1 // pred_fallthru
      _
    // Predicated region
    $region10: #{tpu_custom_call.1} parent=1 // pred_check
      _
    $region11: #{tpu_custom_call.1} parent=1 // pred_check_branch
      %15 = sbr.rel (0) target = $region13
    $region12: #{tpu_custom_call.1} parent=1 // pred_region
      %s17 = ssub.s32 512, 512
      %18 = vsyncadd [#allocation3], %s17
      %s20 = sshll.u32 [#allocation2], 4
      %s21 = int_to_ptr.vmem [resolvable:$true] %s20
      %23 = dma.hbm_to_vmem [thread:$0]  %s2, 512, %s21, [#allocation3]
    $region13: #{tpu_custom_call.1} parent=1 // pred_fallthru
      _
    // Predicated region
    $region14: #{tpu_custom_call.1} parent=1 // pred_check
      _
    $region15: #{tpu_custom_call.1} parent=1 // pred_check_branch
      %25 = sbr.rel (0) target = $region17
    $region16: #{tpu_custom_call.1} parent=1 // pred_region
      %26 = dma.done [#allocation3], 512
    $region17: #{tpu_custom_call.1} parent=1 // pred_fallthru
      _
    %v27 = vld [vmem:[%s1] sm:$0xff]
    %v28 = vld [vmem:[%s0] sm:$0xff]
    %30 = vset.pattern.permute.xlu0 0
    %31 = vperm.xlu0 %30, %v28
    %v32 = vpop.permute.xlu0 %31
    %v35 = vlaneseq
    %v36 = vshrl.u32 %v35, 7
    %v37 = vsub.s32 0, %v36
    %v38 = vrot.slane %v27, %v37
    %v39 = vlaneseq
    %v40 = vshrl.u32 %v39, 7
    %v41 = vsub.s32 2, %v40
    %v42 = vrot.slane %v27, %v41
    %v43 = vlaneseq
    %v44 = vshrl.u32 %v43, 7
    %v45 = vsub.s32 4, %v44
    %v46 = vrot.slane %v27, %v45
    %v47 = vlaneseq
    %v48 = vshrl.u32 %v47, 7
    %v49 = vsub.s32 6, %v48
    %v50 = vrot.slane %v27, %v49
    %v55 = vlaneseq
    %v56 = vshrl.u32 %v55, 7
    %v57 = vsub.s32 0, %v56
    %v58 = vrot.slane %v38, %v57
    %v59 = vlaneseq
    %v60 = vshrl.u32 %v59, 7
    %v61 = vsub.s32 0, %v60
    %v62 = vrot.slane %v42, %v61
    %v63 = vlaneseq
    %v64 = vshrl.u32 %v63, 7
    %v65 = vsub.s32 0, %v64
    %v66 = vrot.slane %v46, %v65
    %v67 = vlaneseq
    %v68 = vshrl.u32 %v67, 7
    %v69 = vsub.s32 0, %v68
    %v70 = vrot.slane %v50, %v69
    %v71 = vmul.f32 %v32, %v58
    %v72 = vmul.f32 %v32, %v62
    %v73 = vmul.f32 %v32, %v66
    %v74 = vmul.f32 %v32, %v70
    %v75 = vlaneseq
    %v76 = vshrl.u32 %v75, 7
    %v77 = vsub.s32 1, %v76
    %v78 = vrot.slane %v27, %v77
    %v79 = vlaneseq
    %v80 = vshrl.u32 %v79, 7
    %v81 = vsub.s32 3, %v80
    %v82 = vrot.slane %v27, %v81
    %v83 = vlaneseq
    %v84 = vshrl.u32 %v83, 7
    %v85 = vsub.s32 5, %v84
    %v86 = vrot.slane %v27, %v85
    %v87 = vlaneseq
    %v88 = vshrl.u32 %v87, 7
    %v89 = vsub.s32 7, %v88
    %v90 = vrot.slane %v27, %v89
    %v95 = vlaneseq
    %v96 = vshrl.u32 %v95, 7
    %v97 = vsub.s32 1, %v96
    %v98 = vrot.slane %v78, %v97
    %v99 = vlaneseq
    %v100 = vshrl.u32 %v99, 7
    %v101 = vsub.s32 1, %v100
    %v102 = vrot.slane %v82, %v101
    %v103 = vlaneseq
    %v104 = vshrl.u32 %v103, 7
    %v105 = vsub.s32 1, %v104
    %v106 = vrot.slane %v86, %v105
    %v107 = vlaneseq
    %v108 = vshrl.u32 %v107, 7
    %v109 = vsub.s32 1, %v108
    %v110 = vrot.slane %v90, %v109
    %v111 = vadd.f32 %v71, %v98
    %v112 = vadd.f32 %v72, %v102
    %v113 = vadd.f32 %v73, %v106
    %v114 = vadd.f32 %v74, %v110
    %v115 = vand.u32 2147483647, %v111
    %vm116 = vcmp.le.f32.partialorder %v115, 0.7853982
    %vm117 = vcmp.lt.s32.totalorder %v111, 0
    %v118 = vand.u32 %v111, 2139095040
    %v119 = vshrl.u32 %v118, 23
    %v120 = vsub.s32 %v119, 127
    %v121 = vand.u32 2147483647, %v111
    %v122 = vand.u32 %v121, 8388607
    %v123 = vor.u32 %v122, 8388608
    %v124 = vsub.s32 0, %v123
    %v125 = vadd.s32 %v120, 1
    %vm126 = vcmp.gt.s32.totalorder %v125, 0
    %v127 = vsel %vm126, %v125, 0
    %v128 = vshrl.u32 %v127, 5
    %v129 = vand.u32 %v127, 31
    %v130 = vsub.s32 32, %v129
    %v131 = vshrl.u32 683565275, %v130
    %v132 = vshll.u32 683565275, %v129
    %v133 = vshrl.u32 2475754826, %v130
    %v134 = vor.u32 %v132, %v133
    %v135 = vshll.u32 2475754826, %v129
    %v136 = vshrl.u32 2131351028, %v130
    %v137 = vor.u32 %v135, %v136
    %v138 = vshll.u32 2131351028, %v129
    %v139 = vshrl.u32 2102212464, %v130
    %v140 = vor.u32 %v138, %v139
    %v141 = vshll.u32 2102212464, %v129
    %v142 = vshrl.u32 920167782, %v130
    %v143 = vor.u32 %v141, %v142
    %v144 = vshll.u32 920167782, %v129
    %v145 = vshrl.u32 1326507024, %v130
    %v146 = vor.u32 %v144, %v145
    %vm147 = vcmp.lt.s32.totalorder %v128, 1
    %vm148 = vcmp.lt.s32.totalorder %v128, 2
    %vm149 = vcmp.lt.s32.totalorder %v128, 3
    %vm150 = vcmp.lt.s32.totalorder %v128, 4
    %v151 = vsel %vm147, %v131, %v134
    %v152 = vsel %vm150, %v140, 2102212464
    %v153 = vsel %vm149, %v137, %v152
    %v154 = vsel %vm148, %v151, %v153
    %v155 = vsel %vm147, %v134, %v137
    %v156 = vsel %vm150, %v143, 920167782
    %v157 = vsel %vm149, %v140, %v156
    %v158 = vsel %vm148, %v155, %v157
    %v159 = vsel %vm147, %v137, %v140
    %v160 = vsel %vm150, %v146, 1326507024
    %v161 = vsel %vm149, %v143, %v160
    %v162 = vsel %vm148, %v159, %v161
    %v163 = vshll.u32 %v123, 8
    %v164 = vmul.u32.u64.compose %v163, %v162
    %v165 = vextract.low.u32 %v164
    %v166 = vextract.high.u32 %v164
    %v167 = vmul.u32.u64.compose %v163, %v158
    %v168 = vextract.low.u32 %v167
    %v169 = vextract.high.u32 %v167
    %v170 = vmul.u32 %v163, %v154
    %v171 = vadd.s32 %v166, %v168
    %vm172 = vc.u32 %v166, %v168
    %v173 = vadd.s32 %v169, 1
    %v174 = vsel %vm172, %v173, %v169
    %v175 = vadd.s32 %v170, %v174
    %v176 = vadd.s32 %v175, 536870912
    %v177 = vshrl.u32 %v176, 30
    %v178 = vshll.u32 %v177, 30
    %v179 = vsub.s32 %v175, %v178
    %vm180 = vcmp.lt.s32.totalorder %v179, 0
    %v181 = vsub.s32 0, %v179
    %v182 = vsel %vm180, %v181, %v179
    %v183 = vclz %v182
    %v184 = vsub.s32 %v183, 2
    %vm185 = vcmp.gt.s32.totalorder 0, %v184
    %v186 = vsel %vm185, 0, %v184
    %v187 = vsub.s32 32, %v186
    %v188 = vshll.u32 %v179, %v186
    %v189 = vshrl.u32 %v171, %v187
    %v190 = vor.u32 %v188, %v189
    %v191 = vsub.s32 4294967266, %v186
    %v192 = vadd.s32 %v191, 127
    %v193 = vshll.u32 %v192, 23
    %v194 = vor.u32 4788187, %v193
    %v195 = vand.u32 2147483647, %v194
    %v197 = vcvt.s32.f32 %v190
    %v198 = vmul.f32 %v197, %v195
    %v199 = vxor.u32 %v198, 2147483648
    %v200 = vsel %vm117, %v199, %v198
    %v201 = vsub.s32 4, %v177
    %v202 = vsel %vm117, %v201, %v177
    %v203 = vsel %vm116, %v111, %v200
    %v204 = vsel %vm116, 0, %v202
    %v205 = vcosq.f32.pop %v203
    %v206 = vsinq.f32.pop %v203
    %vm207 = vweird.f32 %v111
    %v208 = vand.u32 %v204, 3
    %vm209 = vcmp.lt.s32.totalorder %v208, 2
    %vm210 = vcmp.eq.s32.totalorder %v208, 0
    %v211 = vxor.u32 %v206, 2147483648
    %v212 = vsel %vm210, %v205, %v211
    %vm213 = vcmp.eq.s32.totalorder %v208, 2
    %v214 = vxor.u32 %v205, 2147483648
    %v215 = vsel %vm213, %v214, %v206
    %v216 = vsel %vm209, %v212, %v215
    %v217 = vsel %vm207, nan, %v216
    %v218 = vand.u32 2147483647, %v112
    %vm219 = vcmp.le.f32.partialorder %v218, 0.7853982
    %vm220 = vcmp.lt.s32.totalorder %v112, 0
    %v221 = vand.u32 %v112, 2139095040
    %v222 = vshrl.u32 %v221, 23
    %v223 = vsub.s32 %v222, 127
    %v224 = vand.u32 2147483647, %v112
    %v225 = vand.u32 %v224, 8388607
    %v226 = vor.u32 %v225, 8388608
    %v227 = vsub.s32 0, %v226
    %v228 = vadd.s32 %v223, 1
    %vm229 = vcmp.gt.s32.totalorder %v228, 0
    %v230 = vsel %vm229, %v228, 0
    %v231 = vshrl.u32 %v230, 5
    %v232 = vand.u32 %v230, 31
    %v233 = vsub.s32 32, %v232
    %v234 = vshrl.u32 683565275, %v233
    %v235 = vshll.u32 683565275, %v232
    %v236 = vshrl.u32 2475754826, %v233
    %v237 = vor.u32 %v235, %v236
    %v238 = vshll.u32 2475754826, %v232
    %v239 = vshrl.u32 2131351028, %v233
    %v240 = vor.u32 %v238, %v239
    %v241 = vshll.u32 2131351028, %v232
    %v242 = vshrl.u32 2102212464, %v233
    %v243 = vor.u32 %v241, %v242
    %v244 = vshll.u32 2102212464, %v232
    %v245 = vshrl.u32 920167782, %v233
    %v246 = vor.u32 %v244, %v245
    %v247 = vshll.u32 920167782, %v232
    %v248 = vshrl.u32 1326507024, %v233
    %v249 = vor.u32 %v247, %v248
    %vm250 = vcmp.lt.s32.totalorder %v231, 1
    %vm251 = vcmp.lt.s32.totalorder %v231, 2
    %vm252 = vcmp.lt.s32.totalorder %v231, 3
    %vm253 = vcmp.lt.s32.totalorder %v231, 4
    %v254 = vsel %vm250, %v234, %v237
    %v255 = vsel %vm253, %v243, 2102212464
    %v256 = vsel %vm252, %v240, %v255
    %v257 = vsel %vm251, %v254, %v256
    %v258 = vsel %vm250, %v237, %v240
    %v259 = vsel %vm253, %v246, 920167782
    %v260 = vsel %vm252, %v243, %v259
    %v261 = vsel %vm251, %v258, %v260
    %v262 = vsel %vm250, %v240, %v243
    %v263 = vsel %vm253, %v249, 1326507024
    %v264 = vsel %vm252, %v246, %v263
    %v265 = vsel %vm251, %v262, %v264
    %v266 = vshll.u32 %v226, 8
    %v267 = vmul.u32.u64.compose %v266, %v265
    %v268 = vextract.low.u32 %v267
    %v269 = vextract.high.u32 %v267
    %v270 = vmul.u32.u64.compose %v266, %v261
    %v271 = vextract.low.u32 %v270
    %v272 = vextract.high.u32 %v270
    %v273 = vmul.u32 %v266, %v257
    %v274 = vadd.s32 %v269, %v271
    %vm275 = vc.u32 %v269, %v271
    %v276 = vadd.s32 %v272, 1
    %v277 = vsel %vm275, %v276, %v272
    %v278 = vadd.s32 %v273, %v277
    %v279 = vadd.s32 %v278, 536870912
    %v280 = vshrl.u32 %v279, 30
    %v281 = vshll.u32 %v280, 30
    %v282 = vsub.s32 %v278, %v281
    %vm283 = vcmp.lt.s32.totalorder %v282, 0
    %v284 = vsub.s32 0, %v282
    %v285 = vsel %vm283, %v284, %v282
    %v286 = vclz %v285
    %v287 = vsub.s32 %v286, 2
    %vm288 = vcmp.gt.s32.totalorder 0, %v287
    %v289 = vsel %vm288, 0, %v287
    %v290 = vsub.s32 32, %v289
    %v291 = vshll.u32 %v282, %v289
    %v292 = vshrl.u32 %v274, %v290
    %v293 = vor.u32 %v291, %v292
    %v294 = vsub.s32 4294967266, %v289
    %v295 = vadd.s32 %v294, 127
    %v296 = vshll.u32 %v295, 23
    %v297 = vor.u32 4788187, %v296
    %v298 = vand.u32 2147483647, %v297
    %v300 = vcvt.s32.f32 %v293
    %v301 = vmul.f32 %v300, %v298
    %v302 = vxor.u32 %v301, 2147483648
    %v303 = vsel %vm220, %v302, %v301
    %v304 = vsub.s32 4, %v280
    %v305 = vsel %vm220, %v304, %v280
    %v306 = vsel %vm219, %v112, %v303
    %v307 = vsel %vm219, 0, %v305
    %v308 = vcosq.f32.pop %v306
    %v309 = vsinq.f32.pop %v306
    %vm310 = vweird.f32 %v112
    %v311 = vand.u32 %v307, 3
    %vm312 = vcmp.lt.s32.totalorder %v311, 2
    %vm313 = vcmp.eq.s32.totalorder %v311, 0
    %v314 = vxor.u32 %v309, 2147483648
    %v315 = vsel %vm313, %v308, %v314
    %vm316 = vcmp.eq.s32.totalorder %v311, 2
    %v317 = vxor.u32 %v308, 2147483648
    %v318 = vsel %vm316, %v317, %v309
    %v319 = vsel %vm312, %v315, %v318
    %v320 = vsel %vm310, nan, %v319
    %v321 = vand.u32 2147483647, %v113
    %vm322 = vcmp.le.f32.partialorder %v321, 0.7853982
    %vm323 = vcmp.lt.s32.totalorder %v113, 0
    %v324 = vand.u32 %v113, 2139095040
    %v325 = vshrl.u32 %v324, 23
    %v326 = vsub.s32 %v325, 127
    %v327 = vand.u32 2147483647, %v113
    %v328 = vand.u32 %v327, 8388607
    %v329 = vor.u32 %v328, 8388608
    %v330 = vsub.s32 0, %v329
    %v331 = vadd.s32 %v326, 1
    %vm332 = vcmp.gt.s32.totalorder %v331, 0
    %v333 = vsel %vm332, %v331, 0
    %v334 = vshrl.u32 %v333, 5
    %v335 = vand.u32 %v333, 31
    %v336 = vsub.s32 32, %v335
    %v337 = vshrl.u32 683565275, %v336
    %v338 = vshll.u32 683565275, %v335
    %v339 = vshrl.u32 2475754826, %v336
    %v340 = vor.u32 %v338, %v339
    %v341 = vshll.u32 2475754826, %v335
    %v342 = vshrl.u32 2131351028, %v336
    %v343 = vor.u32 %v341, %v342
    %v344 = vshll.u32 2131351028, %v335
    %v345 = vshrl.u32 2102212464, %v336
    %v346 = vor.u32 %v344, %v345
    %v347 = vshll.u32 2102212464, %v335
    %v348 = vshrl.u32 920167782, %v336
    %v349 = vor.u32 %v347, %v348
    %v350 = vshll.u32 920167782, %v335
    %v351 = vshrl.u32 1326507024, %v336
    %v352 = vor.u32 %v350, %v351
    %vm353 = vcmp.lt.s32.totalorder %v334, 1
    %vm354 = vcmp.lt.s32.totalorder %v334, 2
    %vm355 = vcmp.lt.s32.totalorder %v334, 3
    %vm356 = vcmp.lt.s32.totalorder %v334, 4
    %v357 = vsel %vm353, %v337, %v340
    %v358 = vsel %vm356, %v346, 2102212464
    %v359 = vsel %vm355, %v343, %v358
    %v360 = vsel %vm354, %v357, %v359
    %v361 = vsel %vm353, %v340, %v343
    %v362 = vsel %vm356, %v349, 920167782
    %v363 = vsel %vm355, %v346, %v362
    %v364 = vsel %vm354, %v361, %v363
    %v365 = vsel %vm353, %v343, %v346
    %v366 = vsel %vm356, %v352, 1326507024
    %v367 = vsel %vm355, %v349, %v366
    %v368 = vsel %vm354, %v365, %v367
    %v369 = vshll.u32 %v329, 8
    %v370 = vmul.u32.u64.compose %v369, %v368
    %v371 = vextract.low.u32 %v370
    %v372 = vextract.high.u32 %v370
    %v373 = vmul.u32.u64.compose %v369, %v364
    %v374 = vextract.low.u32 %v373
    %v375 = vextract.high.u32 %v373
    %v376 = vmul.u32 %v369, %v360
    %v377 = vadd.s32 %v372, %v374
    %vm378 = vc.u32 %v372, %v374
    %v379 = vadd.s32 %v375, 1
    %v380 = vsel %vm378, %v379, %v375
    %v381 = vadd.s32 %v376, %v380
    %v382 = vadd.s32 %v381, 536870912
    %v383 = vshrl.u32 %v382, 30
    %v384 = vshll.u32 %v383, 30
    %v385 = vsub.s32 %v381, %v384
    %vm386 = vcmp.lt.s32.totalorder %v385, 0
    %v387 = vsub.s32 0, %v385
    %v388 = vsel %vm386, %v387, %v385
    %v389 = vclz %v388
    %v390 = vsub.s32 %v389, 2
    %vm391 = vcmp.gt.s32.totalorder 0, %v390
    %v392 = vsel %vm391, 0, %v390
    %v393 = vsub.s32 32, %v392
    %v394 = vshll.u32 %v385, %v392
    %v395 = vshrl.u32 %v377, %v393
    %v396 = vor.u32 %v394, %v395
    %v397 = vsub.s32 4294967266, %v392
    %v398 = vadd.s32 %v397, 127
    %v399 = vshll.u32 %v398, 23
    %v400 = vor.u32 4788187, %v399
    %v401 = vand.u32 2147483647, %v400
    %v403 = vcvt.s32.f32 %v396
    %v404 = vmul.f32 %v403, %v401
    %v405 = vxor.u32 %v404, 2147483648
    %v406 = vsel %vm323, %v405, %v404
    %v407 = vsub.s32 4, %v383
    %v408 = vsel %vm323, %v407, %v383
    %v409 = vsel %vm322, %v113, %v406
    %v410 = vsel %vm322, 0, %v408
    %v411 = vcosq.f32.pop %v409
    %v412 = vsinq.f32.pop %v409
    %vm413 = vweird.f32 %v113
    %v414 = vand.u32 %v410, 3
    %vm415 = vcmp.lt.s32.totalorder %v414, 2
    %vm416 = vcmp.eq.s32.totalorder %v414, 0
    %v417 = vxor.u32 %v412, 2147483648
    %v418 = vsel %vm416, %v411, %v417
    %vm419 = vcmp.eq.s32.totalorder %v414, 2
    %v420 = vxor.u32 %v411, 2147483648
    %v421 = vsel %vm419, %v420, %v412
    %v422 = vsel %vm415, %v418, %v421
    %v423 = vsel %vm413, nan, %v422
    %v424 = vand.u32 2147483647, %v114
    %vm425 = vcmp.le.f32.partialorder %v424, 0.7853982
    %vm426 = vcmp.lt.s32.totalorder %v114, 0
    %v427 = vand.u32 %v114, 2139095040
    %v428 = vshrl.u32 %v427, 23
    %v429 = vsub.s32 %v428, 127
    %v430 = vand.u32 2147483647, %v114
    %v431 = vand.u32 %v430, 8388607
    %v432 = vor.u32 %v431, 8388608
    %v433 = vsub.s32 0, %v432
    %v434 = vadd.s32 %v429, 1
    %vm435 = vcmp.gt.s32.totalorder %v434, 0
    %v436 = vsel %vm435, %v434, 0
    %v437 = vshrl.u32 %v436, 5
    %v438 = vand.u32 %v436, 31
    %v439 = vsub.s32 32, %v438
    %v440 = vshrl.u32 683565275, %v439
    %v441 = vshll.u32 683565275, %v438
    %v442 = vshrl.u32 2475754826, %v439
    %v443 = vor.u32 %v441, %v442
    %v444 = vshll.u32 2475754826, %v438
    %v445 = vshrl.u32 2131351028, %v439
    %v446 = vor.u32 %v444, %v445
    %v447 = vshll.u32 2131351028, %v438
    %v448 = vshrl.u32 2102212464, %v439
    %v449 = vor.u32 %v447, %v448
    %v450 = vshll.u32 2102212464, %v438
    %v451 = vshrl.u32 920167782, %v439
    %v452 = vor.u32 %v450, %v451
    %v453 = vshll.u32 920167782, %v438
    %v454 = vshrl.u32 1326507024, %v439
    %v455 = vor.u32 %v453, %v454
    %vm456 = vcmp.lt.s32.totalorder %v437, 1
    %vm457 = vcmp.lt.s32.totalorder %v437, 2
    %vm458 = vcmp.lt.s32.totalorder %v437, 3
    %vm459 = vcmp.lt.s32.totalorder %v437, 4
    %v460 = vsel %vm456, %v440, %v443
    %v461 = vsel %vm459, %v449, 2102212464
    %v462 = vsel %vm458, %v446, %v461
    %v463 = vsel %vm457, %v460, %v462
    %v464 = vsel %vm456, %v443, %v446
    %v465 = vsel %vm459, %v452, 920167782
    %v466 = vsel %vm458, %v449, %v465
    %v467 = vsel %vm457, %v464, %v466
    %v468 = vsel %vm456, %v446, %v449
    %v469 = vsel %vm459, %v455, 1326507024
    %v470 = vsel %vm458, %v452, %v469
    %v471 = vsel %vm457, %v468, %v470
    %v472 = vshll.u32 %v432, 8
    %v473 = vmul.u32.u64.compose %v472, %v471
    %v474 = vextract.low.u32 %v473
    %v475 = vextract.high.u32 %v473
    %v476 = vmul.u32.u64.compose %v472, %v467
    %v477 = vextract.low.u32 %v476
    %v478 = vextract.high.u32 %v476
    %v479 = vmul.u32 %v472, %v463
    %v480 = vadd.s32 %v475, %v477
    %vm481 = vc.u32 %v475, %v477
    %v482 = vadd.s32 %v478, 1
    %v483 = vsel %vm481, %v482, %v478
    %v484 = vadd.s32 %v479, %v483
    %v485 = vadd.s32 %v484, 536870912
    %v486 = vshrl.u32 %v485, 30
    %v487 = vshll.u32 %v486, 30
    %v488 = vsub.s32 %v484, %v487
    %vm489 = vcmp.lt.s32.totalorder %v488, 0
    %v490 = vsub.s32 0, %v488
    %v491 = vsel %vm489, %v490, %v488
    %v492 = vclz %v491
    %v493 = vsub.s32 %v492, 2
    %vm494 = vcmp.gt.s32.totalorder 0, %v493
    %v495 = vsel %vm494, 0, %v493
    %v496 = vsub.s32 32, %v495
    %v497 = vshll.u32 %v488, %v495
    %v498 = vshrl.u32 %v480, %v496
    %v499 = vor.u32 %v497, %v498
    %v500 = vsub.s32 4294967266, %v495
    %v501 = vadd.s32 %v500, 127
    %v502 = vshll.u32 %v501, 23
    %v503 = vor.u32 4788187, %v502
    %v504 = vand.u32 2147483647, %v503
    %v506 = vcvt.s32.f32 %v499
    %v507 = vmul.f32 %v506, %v504
    %v508 = vxor.u32 %v507, 2147483648
    %v509 = vsel %vm426, %v508, %v507
    %v510 = vsub.s32 4, %v486
    %v511 = vsel %vm426, %v510, %v486
    %v512 = vsel %vm425, %v114, %v509
    %v513 = vsel %vm425, 0, %v511
    %v514 = vcosq.f32.pop %v512
    %v515 = vsinq.f32.pop %v512
    %vm516 = vweird.f32 %v114
    %v517 = vand.u32 %v513, 3
    %vm518 = vcmp.lt.s32.totalorder %v517, 2
    %vm519 = vcmp.eq.s32.totalorder %v517, 0
    %v520 = vxor.u32 %v515, 2147483648
    %v521 = vsel %vm519, %v514, %v520
    %vm522 = vcmp.eq.s32.totalorder %v517, 2
    %v523 = vxor.u32 %v514, 2147483648
    %v524 = vsel %vm522, %v523, %v515
    %v525 = vsel %vm518, %v521, %v524
    %v526 = vsel %vm516, nan, %v525
    %v527 = vld [vmem:[#allocation2] sm:$0xff]
    %v528 = vld [vmem:[#allocation2 + $0x8] sm:$0xff]
    %v529 = vld [vmem:[#allocation2 + $0x10] sm:$0xff]
    %v530 = vld [vmem:[#allocation2 + $0x18] sm:$0xff]
    %v531 = vmul.f32 %v527, 5.656854
    %v532 = vmul.f32 %v528, 5.656854
    %v533 = vmul.f32 %v529, 5.656854
    %v534 = vmul.f32 %v530, 5.656854
    %v535 = vadd.f32 %v531, %v217
    %v536 = vadd.f32 %v532, %v320
    %v537 = vadd.f32 %v533, %v423
    %v538 = vadd.f32 %v534, %v526
    %539 = vst [vmem:[#allocation5] sm:$0xff] %v535
    %540 = vst [vmem:[#allocation5 + $0x8] sm:$0xff] %v536
    %541 = vst [vmem:[#allocation5 + $0x10] sm:$0xff] %v537
    %542 = vst [vmem:[#allocation5 + $0x18] sm:$0xff] %v538
    // Predicated region
    $region18: #{tpu_custom_call.1} parent=1 // pred_check
      _
    $region19: #{tpu_custom_call.1} parent=1 // pred_check_branch
      %544 = sbr.rel (0) target = $region21
    $region20: #{tpu_custom_call.1} parent=1 // pred_region
      %s546 = ssub.s32 512, 512
      %547 = vsyncadd [#allocation4], %s546
      %s549 = sshll.u32 [#allocation5], 4
      %s550 = int_to_ptr.vmem [resolvable:$true] %s549
      %552 = dma.vmem_to_hbm [thread:$0]  %s550, 512, %s3, [#allocation4]
    $region21: #{tpu_custom_call.1} parent=1 // pred_fallthru
      _
    // Predicated region
    $region22: #{tpu_custom_call.1} parent=1 // pred_check
      _
    $region23: #{tpu_custom_call.1} parent=1 // pred_check_branch
      %554 = sbr.rel (0) target = $region25
    $region24: #{tpu_custom_call.1} parent=1 // pred_region
      %555 = dma.done [#allocation4], 512
    $region25: #{tpu_custom_call.1} parent=1 // pred_fallthru
      _
    %556 = vsyncpa [#allocation3], 1
    %557 = vsyncpa [#allocation4], 1

</llo_original>
